<compile_context>
chip_gen: v7x
topology: tpu7x:2x2x1
jax: 0.10.0
libtpu: 0.0.40
codegen_flags: <defaults>
</compile_context>

<pallas_src>
import functools

import jax
import jax.numpy as jnp
from jax.experimental import pallas as pl
from jax.experimental.pallas import tpu as pltpu


def _sublane_tile(dtype):
    return {2: 16, 1: 32}.get(jnp.dtype(dtype).itemsize, 8)


def _round_up(c, m):
    return max(m, ((c + m - 1) // m) * m)


def _auto_imgs_per_step(n_batch, hw):
    """Largest divisor of n_batch that still leaves >= 2 grid steps (v7x has
    two TensorCores) while keeping the lane extent modest."""
    if n_batch <= 1:
        return 1
    best = 1
    for d in range(1, n_batch + 1):
        if n_batch % d == 0 and n_batch // d >= 2 and d * hw <= 8192:
            best = d
    return best


# --------------------------------------------------------------------------
# Kernel
# --------------------------------------------------------------------------
def _bottleneck_kernel(x_ref, mask_ref, w1_ref, b1_ref, w2_ref, b2_ref,
                       out_ref, *, W, L, add):
    """Fused Bottleneck_SDP forward for one lane-batched block (C, L)."""
    x = x_ref[0]                                        # (c1p, L), MXU dtype

    def conv3x3_bn(a, w_ref, b_ref):
        # a: (ci_p, L) in MXU dtype -> f32 (co_p, L). BN scale is already
        # folded into w_ref; bias added here. 3 dy-group matmuls accumulated
        # (no 9x im2col slab is ever materialized).
        acc = b_ref[...]                                # (co_p, 1) f32
        for g, dy in enumerate((-1, 0, 1)):
            pieces = []
            for dx in (-1, 0, 1):
                s = dy * W + dx                         # flat spatial shift
                shifted = a if s == 0 else pltpu.roll(a, (-s) % L, axis=1)
                if dy == 0 and dx == 0:
                    pieces.append(shifted)              # center mask == 1
                else:
                    pieces.append(shifted * mask_ref[g * 3 + dx + 1])
            grp = jnp.concatenate(pieces, axis=0)       # (3*ci_p, L)
            acc = acc + jnp.dot(w_ref[g], grp,
                                preferred_element_type=jnp.float32)
        return acc                                      # (co_p, L) f32

    # ---- cv1: conv3x3(c1 -> c_) + folded BN + SiLU ----
    y = conv3x3_bn(x, w1_ref, b1_ref)
    y = y * jax.nn.sigmoid(y)                           # SiLU in f32 (EUP)

    # ---- cv2: conv3x3(c_ -> c2) + folded BN + SiLU ----
    z = conv3x3_bn(y.astype(x.dtype), w2_ref, b2_ref)
    z = z * jax.nn.sigmoid(z)

    if add:                                             # shortcut and c1 == c2
        z = z + x.astype(jnp.float32)

    out_ref[0] = z.astype(out_ref.dtype)


# --------------------------------------------------------------------------
# One-time packing (weight-stationary inference)
# --------------------------------------------------------------------------
def bottleneck_sdp_pack(w1, s1, b1, w2, s2, b2, *, n_batch, H, W,
                        shortcut=True, mxu_dtype=jnp.bfloat16,
                        imgs_per_step=None):
    """Fold BN scale into conv weights, pack weights as (3 dy-groups, co_p,
    3*ci_p), build the 9 border-validity masks. Call once per model."""
    c1, c_ = w1.shape[2], w1.shape[3]
    c2 = w2.shape[3]
    sub = _sublane_tile(mxu_dtype)
    c1p, c_p, c2p = _round_up(c1, sub), _round_up(c_, sub), _round_up(c2, sub)

    HW = H * W
    n_per = imgs_per_step or _auto_imgs_per_step(n_batch, HW)
    L = n_per * HW

    def pack_conv(w, scale, bias, cip, cop):
        kh, kw, ci, co = w.shape
        wf = w * scale.reshape(1, 1, 1, co)                 # fold BN scale
        wf = jnp.transpose(wf, (0, 3, 1, 2))                # (dy, co, dx, ci)
        wf = jnp.pad(wf, ((0, 0), (0, cop - co), (0, 0), (0, cip - ci)))
        wf = wf.reshape(kh, cop, kw * cip).astype(mxu_dtype)
        bf = jnp.pad(bias, (0, cop - co)).reshape(cop, 1).astype(jnp.float32)
        return wf, bf

    w1g, b1p = pack_conv(w1, s1, b1, c1p, c_p)
    w2g, b2p = pack_conv(w2, s2, b2, c_p, c2p)

    # Border-validity masks for the 9 taps, tiled once per image in a step.
    ii = jnp.arange(H)[:, None]
    jj = jnp.arange(W)[None, :]
    rows = []
    for dy in (-1, 0, 1):
        for dx in (-1, 0, 1):
            m = ((ii + dy >= 0) & (ii + dy < H)
                 & (jj + dx >= 0) & (jj + dx < W))
            rows.append(m.reshape(1, HW))
    masks = jnp.stack(rows, axis=0).astype(mxu_dtype)       # (9, 1, HW)
    masks = jnp.tile(masks, (1, 1, n_per))                  # (9, 1, L)

    params = dict(masks=masks, w1=w1g, b1=b1p, w2=w2g, b2=b2p)
    meta = dict(H=H, W=W, c1=c1, c2=c2, c1p=c1p, c_p=c_p, c2p=c2p,
                n_per=n_per, L=L, add=bool(shortcut and c1 == c2),
                mxu_dtype=mxu_dtype)
    return params, meta


# --------------------------------------------------------------------------
# Per-call forward
# --------------------------------------------------------------------------
def bottleneck_sdp_apply(x_nchw, params, meta):
    """x_nchw: (N, c1, H, W) -> (N, c2, H, W)."""
    N, c1, H, W = x_nchw.shape
    HW = H * W
    n_per, L = meta["n_per"], meta["L"]
    c1p, c_p, c2p, c2 = meta["c1p"], meta["c_p"], meta["c2p"], meta["c2"]
    steps = -(-N // n_per)
    out_dtype = x_nchw.dtype

    # NCHW -> (steps, c1p, n_per*HW): images sit side by side along lanes.
    xp = x_nchw.reshape(N, c1, HW)
    if steps * n_per != N:
        xp = jnp.pad(xp, ((0, steps * n_per - N), (0, 0), (0, 0)))
    xp = xp.reshape(steps, n_per, c1, HW)
    xp = jnp.transpose(xp, (0, 2, 1, 3)).reshape(steps, c1, L)
    xp = jnp.pad(xp, ((0, 0), (0, c1p - c1), (0, 0))).astype(meta["mxu_dtype"])

    kernel = functools.partial(_bottleneck_kernel, W=W, L=L, add=meta["add"])

    # Explicit scoped-VMEM budget (v7x has only 64 MiB physical VMEM).
    itm = jnp.dtype(meta["mxu_dtype"]).itemsize
    in_bytes = ((c1p * L + 9 * L + 3 * c_p * 3 * c1p + 3 * c2p * 3 * c_p) * itm
                + (c_p + c2p) * 4)
    out_bytes = c2p * L * jnp.dtype(out_dtype).itemsize
    live_bytes = 3 * max(c1p, c_p) * L * itm + 2 * max(c_p, c2p) * L * 4
    vmem_limit = int(min(max(2 * (in_bytes + out_bytes) + 4 * live_bytes,
                             2 << 20), 32 << 20))

    out = pl.pallas_call(
        kernel,
        out_shape=jax.ShapeDtypeStruct((steps, c2p, L), out_dtype),
        grid_spec=pltpu.PrefetchScalarGridSpec(
            num_scalar_prefetch=0,
            grid=(steps,),
            in_specs=[
                pl.BlockSpec((1, c1p, L), lambda n: (n, 0, 0)),
                pl.BlockSpec((9, 1, L), lambda n: (0, 0, 0)),
                pl.BlockSpec((3, c_p, 3 * c1p), lambda n: (0, 0, 0)),
                pl.BlockSpec((c_p, 1), lambda n: (0, 0)),
                pl.BlockSpec((3, c2p, 3 * c_p), lambda n: (0, 0, 0)),
                pl.BlockSpec((c2p, 1), lambda n: (0, 0)),
            ],
            out_specs=pl.BlockSpec((1, c2p, L), lambda n: (n, 0, 0)),
        ),
        compiler_params=pltpu.CompilerParams(
            dimension_semantics=("parallel",),
            vmem_limit_bytes=vmem_limit),
    )(xp, params["masks"], params["w1"], params["b1"],
      params["w2"], params["b2"])

    # (steps, c2p, n_per*HW) -> NCHW, dropping channel/batch padding.
    out = out[:, :c2, :].reshape(steps, c2, n_per, HW)
    out = jnp.transpose(out, (0, 2, 1, 3)).reshape(steps * n_per, c2, H, W)
    return out[:N]


# --------------------------------------------------------------------------
# Helpers for the test
# --------------------------------------------------------------------------
def _fold_bn(gamma, beta, mean, var, eps=1e-3):
    # Ultralytics Conv uses BatchNorm2d(eps=1e-3, momentum=0.03).
    scale = gamma / jnp.sqrt(var + eps)
    bias = beta - mean * scale
    return scale, bias


def _ref_forward(x_nchw, w1, s1, b1, w2, s2, b2, add):
    dn = jax.lax.conv_dimension_numbers(x_nchw.shape, w1.shape,
                                        ('NCHW', 'HWIO', 'NCHW'))
    y = jax.lax.conv_general_dilated(x_nchw, w1, (1, 1), 'SAME',
                                     dimension_numbers=dn)
    y = y * s1.reshape(1, -1, 1, 1) + b1.reshape(1, -1, 1, 1)
    y = y * jax.nn.sigmoid(y)
    dn2 = jax.lax.conv_dimension_numbers(y.shape, w2.shape,
                                         ('NCHW', 'HWIO', 'NCHW'))
    z = jax.lax.conv_general_dilated(y, w2, (1, 1), 'SAME',
                                     dimension_numbers=dn2)
    z = z * s2.reshape(1, -1, 1, 1) + b2.reshape(1, -1, 1, 1)
    z = z * jax.nn.sigmoid(z)
    return x_nchw + z if add else z


if __name__ == "__main__":
    # Module config: Bottleneck_SDP(c1=4, c2=4, shortcut=True, g=1, k=(3,3), e=0.5)
    N, c1, c2, H, W = 2, 4, 4, 16, 16
    e = 0.5
    c_ = int(c2 * e)
    shortcut = True

    key = jax.random.PRNGKey(0)
    k = jax.random.split(key, 11)

    x_nchw = jax.random.normal(k[0], (N, c1, H, W), jnp.float32)
    w1 = 0.3 * jax.random.normal(k[1], (3, 3, c1, c_), jnp.float32)
    w2 = 0.3 * jax.random.normal(k[2], (3, 3, c_, c2), jnp.float32)

    g1 = 1.0 + 0.1 * jax.random.normal(k[3], (c_,), jnp.float32)
    be1 = 0.1 * jax.random.normal(k[4], (c_,), jnp.float32)
    m1 = 0.1 * jax.random.normal(k[5], (c_,), jnp.float32)
    v1 = 0.5 + jnp.abs(jax.random.normal(k[6], (c_,), jnp.float32))
    g2 = 1.0 + 0.1 * jax.random.normal(k[7], (c2,), jnp.float32)
    be2 = 0.1 * jax.random.normal(k[8], (c2,), jnp.float32)
    m2 = 0.1 * jax.random.normal(k[9], (c2,), jnp.float32)
    v2 = 0.5 + jnp.abs(jax.random.normal(k[10], (c2,), jnp.float32))

    s1, b1 = _fold_bn(g1, be1, m1, v1)
    s2, b2 = _fold_bn(g2, be2, m2, v2)

    ref = _ref_forward(x_nchw, w1, s1, b1, w2, s2, b2,
                       add=(shortcut and c1 == c2))

    # --- strict correctness check with f32 MXU operands ---
    params32, meta32 = bottleneck_sdp_pack(
        w1, s1, b1, w2, s2, b2, n_batch=N, H=H, W=W, shortcut=shortcut,
        mxu_dtype=jnp.float32)
    fwd32 = jax.jit(lambda x, p: bottleneck_sdp_apply(x, p, meta32))
    out32 = jax.block_until_ready(fwd32(x_nchw, params32))
    assert out32.shape == ref.shape
    assert jnp.allclose(out32, ref, atol=1e-3, rtol=1e-3), \
        float(jnp.max(jnp.abs(out32 - ref)))

    # --- default path: bf16 MXU operands, f32 accumulation + epilogue ---
    params16, meta16 = bottleneck_sdp_pack(
        w1, s1, b1, w2, s2, b2, n_batch=N, H=H, W=W, shortcut=shortcut)
    fwd16 = jax.jit(lambda x, p: bottleneck_sdp_apply(x, p, meta16))
    out16 = jax.block_until_ready(fwd16(x_nchw, params16))
    assert out16.shape == ref.shape
    # Tolerance scaled to bf16's ~2^-9 relative rounding of the MXU operands.
    assert jnp.allclose(out16, ref, atol=3e-1, rtol=5e-2), \
        float(jnp.max(jnp.abs(out16 - ref)))

    print("KERNEL_OK")
</pallas_src>

<mosaic_0001>
module attributes {stable_mosaic.version = 11 : i64} {
  func.func @_bottleneck_kernel(%arg0: i32, %arg1: memref<1x8x256xf32, #tpu.memory_space<vmem>>, %arg2: memref<9x1x256xf32, #tpu.memory_space<vmem>>, %arg3: memref<3x8x24xf32, #tpu.memory_space<vmem>>, %arg4: memref<8x1xf32, #tpu.memory_space<vmem>>, %arg5: memref<3x8x24xf32, #tpu.memory_space<vmem>>, %arg6: memref<8x1xf32, #tpu.memory_space<vmem>>, %arg7: memref<1x8x256xf32, #tpu.memory_space<vmem>>) attributes {dimension_semantics = [#tpu.dimension_semantics<parallel>], iteration_bounds = array<i64: 2>, scalar_prefetch = 0 : i64, scratch_operands = 0 : i64, tpu.core_type = #tpu.core_type<tc>, window_params = [{transform_indices = @transform_0, window_bounds = array<i64: 1, 8, 256>}, {pipeline_mode = #tpu.pipeline_mode<synchronous>, transform_indices = @transform_1, window_bounds = array<i64: 9, 1, 256>}, {pipeline_mode = #tpu.pipeline_mode<synchronous>, transform_indices = @transform_2, window_bounds = array<i64: 3, 8, 24>}, {pipeline_mode = #tpu.pipeline_mode<synchronous>, transform_indices = @transform_3, window_bounds = array<i64: 8, 1>}, {pipeline_mode = #tpu.pipeline_mode<synchronous>, transform_indices = @transform_4, window_bounds = array<i64: 3, 8, 24>}, {pipeline_mode = #tpu.pipeline_mode<synchronous>, transform_indices = @transform_5, window_bounds = array<i64: 8, 1>}, {transform_indices = @transform_6, window_bounds = array<i64: 1, 8, 256>}]} {
    %c0 = arith.constant 0 : index
    %c0_0 = arith.constant 0 : index
    %c0_1 = arith.constant 0 : index
    %0 = vector.load %arg1[%c0, %c0_0, %c0_1] : memref<1x8x256xf32, #tpu.memory_space<vmem>>, vector<1x8x256xf32>
    %1 = vector.shape_cast %0 : vector<1x8x256xf32> to vector<8x256xf32>
    %c0_2 = arith.constant 0 : index
    %c0_3 = arith.constant 0 : index
    %2 = vector.load %arg4[%c0_2, %c0_3] : memref<8x1xf32, #tpu.memory_space<vmem>>, vector<8x1xf32>
    %c17_i32 = arith.constant 17 : i32
    %3 = tpu.dynamic_rotate %1 by %c17_i32 dim 1 : vector<8x256xf32>, i32 -> vector<8x256xf32>
    %c0_4 = arith.constant 0 : index
    %c0_5 = arith.constant 0 : index
    %c0_6 = arith.constant 0 : index
    %4 = vector.load %arg2[%c0_4, %c0_5, %c0_6] : memref<9x1x256xf32, #tpu.memory_space<vmem>>, vector<1x1x256xf32>
    %5 = vector.shape_cast %4 : vector<1x1x256xf32> to vector<1x256xf32>
    %6 = vector.broadcast %5 : vector<1x256xf32> to vector<8x256xf32>
    %7 = arith.mulf %3, %6 : vector<8x256xf32>
    %c16_i32 = arith.constant 16 : i32
    %8 = tpu.dynamic_rotate %1 by %c16_i32 dim 1 : vector<8x256xf32>, i32 -> vector<8x256xf32>
    %c1 = arith.constant 1 : index
    %c0_7 = arith.constant 0 : index
    %c0_8 = arith.constant 0 : index
    %9 = vector.load %arg2[%c1, %c0_7, %c0_8] : memref<9x1x256xf32, #tpu.memory_space<vmem>>, vector<1x1x256xf32>
    %10 = vector.shape_cast %9 : vector<1x1x256xf32> to vector<1x256xf32>
    %11 = vector.broadcast %10 : vector<1x256xf32> to vector<8x256xf32>
    %12 = arith.mulf %8, %11 : vector<8x256xf32>
    %c15_i32 = arith.constant 15 : i32
    %13 = tpu.dynamic_rotate %1 by %c15_i32 dim 1 : vector<8x256xf32>, i32 -> vector<8x256xf32>
    %c2 = arith.constant 2 : index
    %c0_9 = arith.constant 0 : index
    %c0_10 = arith.constant 0 : index
    %14 = vector.load %arg2[%c2, %c0_9, %c0_10] : memref<9x1x256xf32, #tpu.memory_space<vmem>>, vector<1x1x256xf32>
    %15 = vector.shape_cast %14 : vector<1x1x256xf32> to vector<1x256xf32>
    %16 = vector.broadcast %15 : vector<1x256xf32> to vector<8x256xf32>
    %17 = arith.mulf %13, %16 : vector<8x256xf32>
    %18 = tpu.concatenate %7, %12, %17 in 0 : vector<8x256xf32>, vector<8x256xf32>, vector<8x256xf32> -> vector<24x256xf32>
    %c0_11 = arith.constant 0 : index
    %c0_12 = arith.constant 0 : index
    %c0_13 = arith.constant 0 : index
    %19 = vector.load %arg3[%c0_11, %c0_12, %c0_13] : memref<3x8x24xf32, #tpu.memory_space<vmem>>, vector<1x8x24xf32>
    %20 = vector.shape_cast %19 : vector<1x8x24xf32> to vector<8x24xf32>
    %cst = arith.constant dense<0.000000e+00> : vector<8x256xf32>
    %21 = tpu.matmul %20, %18, %cst {dimension_numbers = #tpu.dot_dimension_numbers<[1], [0], [0], [1], [0, 0, 1, 1], [], []>} : vector<8x24xf32>, vector<24x256xf32>, vector<8x256xf32> -> vector<8x256xf32>
    %22 = vector.broadcast %2 : vector<8x1xf32> to vector<8x256xf32>
    %23 = arith.addf %22, %21 : vector<8x256xf32>
    %c1_i32 = arith.constant 1 : i32
    %24 = tpu.dynamic_rotate %1 by %c1_i32 dim 1 : vector<8x256xf32>, i32 -> vector<8x256xf32>
    %c3 = arith.constant 3 : index
    %c0_14 = arith.constant 0 : index
    %c0_15 = arith.constant 0 : index
    %25 = vector.load %arg2[%c3, %c0_14, %c0_15] : memref<9x1x256xf32, #tpu.memory_space<vmem>>, vector<1x1x256xf32>
    %26 = vector.shape_cast %25 : vector<1x1x256xf32> to vector<1x256xf32>
    %27 = vector.broadcast %26 : vector<1x256xf32> to vector<8x256xf32>
    %28 = arith.mulf %24, %27 : vector<8x256xf32>
    %c255_i32 = arith.constant 255 : i32
    %29 = tpu.dynamic_rotate %1 by %c255_i32 dim 1 : vector<8x256xf32>, i32 -> vector<8x256xf32>
    %c5 = arith.constant 5 : index
    %c0_16 = arith.constant 0 : index
    %c0_17 = arith.constant 0 : index
    %30 = vector.load %arg2[%c5, %c0_16, %c0_17] : memref<9x1x256xf32, #tpu.memory_space<vmem>>, vector<1x1x256xf32>
    %31 = vector.shape_cast %30 : vector<1x1x256xf32> to vector<1x256xf32>
    %32 = vector.broadcast %31 : vector<1x256xf32> to vector<8x256xf32>
    %33 = arith.mulf %29, %32 : vector<8x256xf32>
    %34 = tpu.concatenate %28, %1, %33 in 0 : vector<8x256xf32>, vector<8x256xf32>, vector<8x256xf32> -> vector<24x256xf32>
    %c1_18 = arith.constant 1 : index
    %c0_19 = arith.constant 0 : index
    %c0_20 = arith.constant 0 : index
    %35 = vector.load %arg3[%c1_18, %c0_19, %c0_20] : memref<3x8x24xf32, #tpu.memory_space<vmem>>, vector<1x8x24xf32>
    %36 = vector.shape_cast %35 : vector<1x8x24xf32> to vector<8x24xf32>
    %cst_21 = arith.constant dense<0.000000e+00> : vector<8x256xf32>
    %37 = tpu.matmul %36, %34, %cst_21 {dimension_numbers = #tpu.dot_dimension_numbers<[1], [0], [0], [1], [0, 0, 1, 1], [], []>} : vector<8x24xf32>, vector<24x256xf32>, vector<8x256xf32> -> vector<8x256xf32>
    %38 = arith.addf %23, %37 : vector<8x256xf32>
    %c241_i32 = arith.constant 241 : i32
    %39 = tpu.dynamic_rotate %1 by %c241_i32 dim 1 : vector<8x256xf32>, i32 -> vector<8x256xf32>
    %c6 = arith.constant 6 : index
    %c0_22 = arith.constant 0 : index
    %c0_23 = arith.constant 0 : index
    %40 = vector.load %arg2[%c6, %c0_22, %c0_23] : memref<9x1x256xf32, #tpu.memory_space<vmem>>, vector<1x1x256xf32>
    %41 = vector.shape_cast %40 : vector<1x1x256xf32> to vector<1x256xf32>
    %42 = vector.broadcast %41 : vector<1x256xf32> to vector<8x256xf32>
    %43 = arith.mulf %39, %42 : vector<8x256xf32>
    %c240_i32 = arith.constant 240 : i32
    %44 = tpu.dynamic_rotate %1 by %c240_i32 dim 1 : vector<8x256xf32>, i32 -> vector<8x256xf32>
    %c7 = arith.constant 7 : index
    %c0_24 = arith.constant 0 : index
    %c0_25 = arith.constant 0 : index
    %45 = vector.load %arg2[%c7, %c0_24, %c0_25] : memref<9x1x256xf32, #tpu.memory_space<vmem>>, vector<1x1x256xf32>
    %46 = vector.shape_cast %45 : vector<1x1x256xf32> to vector<1x256xf32>
    %47 = vector.broadcast %46 : vector<1x256xf32> to vector<8x256xf32>
    %48 = arith.mulf %44, %47 : vector<8x256xf32>
    %c239_i32 = arith.constant 239 : i32
    %49 = tpu.dynamic_rotate %1 by %c239_i32 dim 1 : vector<8x256xf32>, i32 -> vector<8x256xf32>
    %c8 = arith.constant 8 : index
    %c0_26 = arith.constant 0 : index
    %c0_27 = arith.constant 0 : index
    %50 = vector.load %arg2[%c8, %c0_26, %c0_27] : memref<9x1x256xf32, #tpu.memory_space<vmem>>, vector<1x1x256xf32>
    %51 = vector.shape_cast %50 : vector<1x1x256xf32> to vector<1x256xf32>
    %52 = vector.broadcast %51 : vector<1x256xf32> to vector<8x256xf32>
    %53 = arith.mulf %49, %52 : vector<8x256xf32>
    %54 = tpu.concatenate %43, %48, %53 in 0 : vector<8x256xf32>, vector<8x256xf32>, vector<8x256xf32> -> vector<24x256xf32>
    %c2_28 = arith.constant 2 : index
    %c0_29 = arith.constant 0 : index
    %c0_30 = arith.constant 0 : index
    %55 = vector.load %arg3[%c2_28, %c0_29, %c0_30] : memref<3x8x24xf32, #tpu.memory_space<vmem>>, vector<1x8x24xf32>
    %56 = vector.shape_cast %55 : vector<1x8x24xf32> to vector<8x24xf32>
    %cst_31 = arith.constant dense<0.000000e+00> : vector<8x256xf32>
    %57 = tpu.matmul %56, %54, %cst_31 {dimension_numbers = #tpu.dot_dimension_numbers<[1], [0], [0], [1], [0, 0, 1, 1], [], []>} : vector<8x24xf32>, vector<24x256xf32>, vector<8x256xf32> -> vector<8x256xf32>
    %58 = arith.addf %38, %57 : vector<8x256xf32>
    %59 = arith.negf %58 : vector<8x256xf32>
    %60 = math.exp %59 : vector<8x256xf32>
    %cst_32 = arith.constant 1.000000e+00 : f32
    %61 = vector.broadcast %cst_32 : f32 to vector<8x256xf32>
    %62 = arith.addf %61, %60 : vector<8x256xf32>
    %63 = arith.divf %61, %62 : vector<8x256xf32>
    %64 = arith.mulf %58, %63 : vector<8x256xf32>
    %c0_33 = arith.constant 0 : index
    %c0_34 = arith.constant 0 : index
    %65 = vector.load %arg6[%c0_33, %c0_34] : memref<8x1xf32, #tpu.memory_space<vmem>>, vector<8x1xf32>
    %c17_i32_35 = arith.constant 17 : i32
    %66 = tpu.dynamic_rotate %64 by %c17_i32_35 dim 1 : vector<8x256xf32>, i32 -> vector<8x256xf32>
    %c0_36 = arith.constant 0 : index
    %c0_37 = arith.constant 0 : index
    %c0_38 = arith.constant 0 : index
    %67 = vector.load %arg2[%c0_36, %c0_37, %c0_38] : memref<9x1x256xf32, #tpu.memory_space<vmem>>, vector<1x1x256xf32>
    %68 = vector.shape_cast %67 : vector<1x1x256xf32> to vector<1x256xf32>
    %69 = vector.broadcast %68 : vector<1x256xf32> to vector<8x256xf32>
    %70 = arith.mulf %66, %69 : vector<8x256xf32>
    %c16_i32_39 = arith.constant 16 : i32
    %71 = tpu.dynamic_rotate %64 by %c16_i32_39 dim 1 : vector<8x256xf32>, i32 -> vector<8x256xf32>
    %c1_40 = arith.constant 1 : index
    %c0_41 = arith.constant 0 : index
    %c0_42 = arith.constant 0 : index
    %72 = vector.load %arg2[%c1_40, %c0_41, %c0_42] : memref<9x1x256xf32, #tpu.memory_space<vmem>>, vector<1x1x256xf32>
    %73 = vector.shape_cast %72 : vector<1x1x256xf32> to vector<1x256xf32>
    %74 = vector.broadcast %73 : vector<1x256xf32> to vector<8x256xf32>
    %75 = arith.mulf %71, %74 : vector<8x256xf32>
    %c15_i32_43 = arith.constant 15 : i32
    %76 = tpu.dynamic_rotate %64 by %c15_i32_43 dim 1 : vector<8x256xf32>, i32 -> vector<8x256xf32>
    %c2_44 = arith.constant 2 : index
    %c0_45 = arith.constant 0 : index
    %c0_46 = arith.constant 0 : index
    %77 = vector.load %arg2[%c2_44, %c0_45, %c0_46] : memref<9x1x256xf32, #tpu.memory_space<vmem>>, vector<1x1x256xf32>
    %78 = vector.shape_cast %77 : vector<1x1x256xf32> to vector<1x256xf32>
    %79 = vector.broadcast %78 : vector<1x256xf32> to vector<8x256xf32>
    %80 = arith.mulf %76, %79 : vector<8x256xf32>
    %81 = tpu.concatenate %70, %75, %80 in 0 : vector<8x256xf32>, vector<8x256xf32>, vector<8x256xf32> -> vector<24x256xf32>
    %c0_47 = arith.constant 0 : index
    %c0_48 = arith.constant 0 : index
    %c0_49 = arith.constant 0 : index
    %82 = vector.load %arg5[%c0_47, %c0_48, %c0_49] : memref<3x8x24xf32, #tpu.memory_space<vmem>>, vector<1x8x24xf32>
    %83 = vector.shape_cast %82 : vector<1x8x24xf32> to vector<8x24xf32>
    %cst_50 = arith.constant dense<0.000000e+00> : vector<8x256xf32>
    %84 = tpu.matmul %83, %81, %cst_50 {dimension_numbers = #tpu.dot_dimension_numbers<[1], [0], [0], [1], [0, 0, 1, 1], [], []>} : vector<8x24xf32>, vector<24x256xf32>, vector<8x256xf32> -> vector<8x256xf32>
    %85 = vector.broadcast %65 : vector<8x1xf32> to vector<8x256xf32>
    %86 = arith.addf %85, %84 : vector<8x256xf32>
    %c1_i32_51 = arith.constant 1 : i32
    %87 = tpu.dynamic_rotate %64 by %c1_i32_51 dim 1 : vector<8x256xf32>, i32 -> vector<8x256xf32>
    %c3_52 = arith.constant 3 : index
    %c0_53 = arith.constant 0 : index
    %c0_54 = arith.constant 0 : index
    %88 = vector.load %arg2[%c3_52, %c0_53, %c0_54] : memref<9x1x256xf32, #tpu.memory_space<vmem>>, vector<1x1x256xf32>
    %89 = vector.shape_cast %88 : vector<1x1x256xf32> to vector<1x256xf32>
    %90 = vector.broadcast %89 : vector<1x256xf32> to vector<8x256xf32>
    %91 = arith.mulf %87, %90 : vector<8x256xf32>
    %c255_i32_55 = arith.constant 255 : i32
    %92 = tpu.dynamic_rotate %64 by %c255_i32_55 dim 1 : vector<8x256xf32>, i32 -> vector<8x256xf32>
    %c5_56 = arith.constant 5 : index
    %c0_57 = arith.constant 0 : index
    %c0_58 = arith.constant 0 : index
    %93 = vector.load %arg2[%c5_56, %c0_57, %c0_58] : memref<9x1x256xf32, #tpu.memory_space<vmem>>, vector<1x1x256xf32>
    %94 = vector.shape_cast %93 : vector<1x1x256xf32> to vector<1x256xf32>
    %95 = vector.broadcast %94 : vector<1x256xf32> to vector<8x256xf32>
    %96 = arith.mulf %92, %95 : vector<8x256xf32>
    %97 = tpu.concatenate %91, %64, %96 in 0 : vector<8x256xf32>, vector<8x256xf32>, vector<8x256xf32> -> vector<24x256xf32>
    %c1_59 = arith.constant 1 : index
    %c0_60 = arith.constant 0 : index
    %c0_61 = arith.constant 0 : index
    %98 = vector.load %arg5[%c1_59, %c0_60, %c0_61] : memref<3x8x24xf32, #tpu.memory_space<vmem>>, vector<1x8x24xf32>
    %99 = vector.shape_cast %98 : vector<1x8x24xf32> to vector<8x24xf32>
    %cst_62 = arith.constant dense<0.000000e+00> : vector<8x256xf32>
    %100 = tpu.matmul %99, %97, %cst_62 {dimension_numbers = #tpu.dot_dimension_numbers<[1], [0], [0], [1], [0, 0, 1, 1], [], []>} : vector<8x24xf32>, vector<24x256xf32>, vector<8x256xf32> -> vector<8x256xf32>
    %101 = arith.addf %86, %100 : vector<8x256xf32>
    %c241_i32_63 = arith.constant 241 : i32
    %102 = tpu.dynamic_rotate %64 by %c241_i32_63 dim 1 : vector<8x256xf32>, i32 -> vector<8x256xf32>
    %c6_64 = arith.constant 6 : index
    %c0_65 = arith.constant 0 : index
    %c0_66 = arith.constant 0 : index
    %103 = vector.load %arg2[%c6_64, %c0_65, %c0_66] : memref<9x1x256xf32, #tpu.memory_space<vmem>>, vector<1x1x256xf32>
    %104 = vector.shape_cast %103 : vector<1x1x256xf32> to vector<1x256xf32>
    %105 = vector.broadcast %104 : vector<1x256xf32> to vector<8x256xf32>
    %106 = arith.mulf %102, %105 : vector<8x256xf32>
    %c240_i32_67 = arith.constant 240 : i32
    %107 = tpu.dynamic_rotate %64 by %c240_i32_67 dim 1 : vector<8x256xf32>, i32 -> vector<8x256xf32>
    %c7_68 = arith.constant 7 : index
    %c0_69 = arith.constant 0 : index
    %c0_70 = arith.constant 0 : index
    %108 = vector.load %arg2[%c7_68, %c0_69, %c0_70] : memref<9x1x256xf32, #tpu.memory_space<vmem>>, vector<1x1x256xf32>
    %109 = vector.shape_cast %108 : vector<1x1x256xf32> to vector<1x256xf32>
    %110 = vector.broadcast %109 : vector<1x256xf32> to vector<8x256xf32>
    %111 = arith.mulf %107, %110 : vector<8x256xf32>
    %c239_i32_71 = arith.constant 239 : i32
    %112 = tpu.dynamic_rotate %64 by %c239_i32_71 dim 1 : vector<8x256xf32>, i32 -> vector<8x256xf32>
    %c8_72 = arith.constant 8 : index
    %c0_73 = arith.constant 0 : index
    %c0_74 = arith.constant 0 : index
    %113 = vector.load %arg2[%c8_72, %c0_73, %c0_74] : memref<9x1x256xf32, #tpu.memory_space<vmem>>, vector<1x1x256xf32>
    %114 = vector.shape_cast %113 : vector<1x1x256xf32> to vector<1x256xf32>
    %115 = vector.broadcast %114 : vector<1x256xf32> to vector<8x256xf32>
    %116 = arith.mulf %112, %115 : vector<8x256xf32>
    %117 = tpu.concatenate %106, %111, %116 in 0 : vector<8x256xf32>, vector<8x256xf32>, vector<8x256xf32> -> vector<24x256xf32>
    %c2_75 = arith.constant 2 : index
    %c0_76 = arith.constant 0 : index
    %c0_77 = arith.constant 0 : index
    %118 = vector.load %arg5[%c2_75, %c0_76, %c0_77] : memref<3x8x24xf32, #tpu.memory_space<vmem>>, vector<1x8x24xf32>
    %119 = vector.shape_cast %118 : vector<1x8x24xf32> to vector<8x24xf32>
    %cst_78 = arith.constant dense<0.000000e+00> : vector<8x256xf32>
    %120 = tpu.matmul %119, %117, %cst_78 {dimension_numbers = #tpu.dot_dimension_numbers<[1], [0], [0], [1], [0, 0, 1, 1], [], []>} : vector<8x24xf32>, vector<24x256xf32>, vector<8x256xf32> -> vector<8x256xf32>
    %121 = arith.addf %101, %120 : vector<8x256xf32>
    %122 = arith.negf %121 : vector<8x256xf32>
    %123 = math.exp %122 : vector<8x256xf32>
    %cst_79 = arith.constant 1.000000e+00 : f32
    %124 = vector.broadcast %cst_79 : f32 to vector<8x256xf32>
    %125 = arith.addf %124, %123 : vector<8x256xf32>
    %126 = arith.divf %124, %125 : vector<8x256xf32>
    %127 = arith.mulf %121, %126 : vector<8x256xf32>
    %128 = arith.addf %127, %1 : vector<8x256xf32>
    %c0_80 = arith.constant 0 : index
    %c0_81 = arith.constant 0 : index
    %c0_82 = arith.constant 0 : index
    %129 = vector.load %arg7[%c0_80, %c0_81, %c0_82] : memref<1x8x256xf32, #tpu.memory_space<vmem>>, vector<1x8x256xf32>
    %130 = vector.shape_cast %129 : vector<1x8x256xf32> to vector<8x256xf32>
    %131 = vector.shape_cast %128 : vector<8x256xf32> to vector<1x8x256xf32>
    tpu.vector_store %arg7[%c0_80, %c0_81, %c0_82], %131 {strides = array<i32>} : memref<1x8x256xf32, #tpu.memory_space<vmem>>, vector<1x8x256xf32>,
    return
  }
  func.func @transform_0(%arg0: i32) -> (i32, i32, i32) {
    %c0_i32 = arith.constant 0 : i32
    %c0_i32_0 = arith.constant 0 : i32
    %c0_i32_1 = arith.constant 0 : i32
    return %arg0, %c0_i32, %c0_i32_0 : i32, i32, i32
  }
  func.func @transform_1(%arg0: i32) -> (i32, i32, i32) {
    %c0_i32 = arith.constant 0 : i32
    %c0_i32_0 = arith.constant 0 : i32
    %c0_i32_1 = arith.constant 0 : i32
    %c0_i32_2 = arith.constant 0 : i32
    return %c0_i32, %c0_i32_0, %c0_i32_1 : i32, i32, i32
  }
  func.func @transform_2(%arg0: i32) -> (i32, i32, i32) {
    %c0_i32 = arith.constant 0 : i32
    %c0_i32_0 = arith.constant 0 : i32
    %c0_i32_1 = arith.constant 0 : i32
    %c0_i32_2 = arith.constant 0 : i32
    return %c0_i32, %c0_i32_0, %c0_i32_1 : i32, i32, i32
  }
  func.func @transform_3(%arg0: i32) -> (i32, i32) {
    %c0_i32 = arith.constant 0 : i32
    %c0_i32_0 = arith.constant 0 : i32
    %c0_i32_1 = arith.constant 0 : i32
    return %c0_i32, %c0_i32_0 : i32, i32
  }
  func.func @transform_4(%arg0: i32) -> (i32, i32, i32) {
    %c0_i32 = arith.constant 0 : i32
    %c0_i32_0 = arith.constant 0 : i32
    %c0_i32_1 = arith.constant 0 : i32
    %c0_i32_2 = arith.constant 0 : i32
    return %c0_i32, %c0_i32_0, %c0_i32_1 : i32, i32, i32
  }
  func.func @transform_5(%arg0: i32) -> (i32, i32) {
    %c0_i32 = arith.constant 0 : i32
    %c0_i32_0 = arith.constant 0 : i32
    %c0_i32_1 = arith.constant 0 : i32
    return %c0_i32, %c0_i32_0 : i32, i32
  }
  func.func @transform_6(%arg0: i32) -> (i32, i32, i32) {
    %c0_i32 = arith.constant 0 : i32
    %c0_i32_0 = arith.constant 0 : i32
    %c0_i32_1 = arith.constant 0 : i32
    return %arg0, %c0_i32, %c0_i32_0 : i32, i32, i32
  }
}

</mosaic_0001>

<llo_original>
// kernel: _lambda_.1
$region0: #{_lambda_.1}
  #allocation0 [shape = 'u32[]', space=smem, size = 0x4, offset = 0x4, fixed_abs, tag = 'smem constant byte address 0x4 - core index']
  #allocation1 [shape = 'u32[144,128]{1,0:T(1,128)}', space=vmem, size = 0x12000, scoped, tag = 'internal scratch']
  %s0 = inlined_call_operand.vmem [shape: f32[2,8,256], index: 0, kind: input, shape index: {}]
  %s1 = inlined_call_operand.vmem [shape: f32[9,1,256], index: 1, kind: input, shape index: {}]
  %s2 = inlined_call_operand.vmem [shape: f32[3,8,24], index: 2, kind: input, shape index: {}]
  %s3 = inlined_call_operand.vmem [shape: f32[8,1], index: 3, kind: input, shape index: {}]
  %s4 = inlined_call_operand.vmem [shape: f32[3,8,24], index: 4, kind: input, shape index: {}]
  %s5 = inlined_call_operand.vmem [shape: f32[8,1], index: 5, kind: input, shape index: {}]
  %s6 = inlined_call_operand.vmem [shape: f32[2,8,256], index: 6, kind: output, shape index: {}]
  %s7 = sld [smem:[#allocation0]]
  $region57: #{_lambda_.1} parent=0
    _
  %s9 = ssub.s32 1, %s7
  %s10 = scalar_select 0, %s9, %s7
  loop: start=0, step=1, limit=4
  $region2: #{_lambda_.1} parent=0 // loop_pre_header
    _
  $region3: #{_lambda_.1} parent=0 // loop_header
    %s12 = sphi 0, %s16
    %p13 = scmp.ge.s32.totalorder %s12, 4
    %s22 = sphi 0, %s24
    %s25 = sphi 0, %s22
    %s26 = sphi 0, %s25
    %s42 = sphi 0, %s26
    %s46 = sphi 0, %s46
    %s48 = sphi 0, %s46
    %s49 = sphi 0, %s48
    %s63 = sphi 0, %s49
    %s67 = sphi 0, %s67
    %s69 = sphi 0, %s67
    %s70 = sphi 0, %s69
    %s84 = sphi 0, %s70
    %s88 = sphi 0, %s88
    %s90 = sphi 0, %s88
    %s91 = sphi 0, %s90
    %s105 = sphi 0, %s91
    %s109 = sphi 0, %s109
    %s111 = sphi 0, %s109
    %s112 = sphi 0, %s111
    %s126 = sphi 0, %s112
    %s130 = sphi 0, %s130
    %s132 = sphi 0, %s130
    %s133 = sphi 0, %s132
    %s147 = sphi 0, %s133
    %s153 = sphi 0, %s155
    %s156 = sphi 0, %s153
    %s157 = sphi 0, %s156
    %s173 = sphi 0, %s157
  $region4: #{_lambda_.1} parent=0 // loop_header_branch
    %15 = sbr.rel (%p13) target = $region8
  $region5: #{_lambda_.1} parent=0 // loop_body
    %s17 = ssub.s32 %s12, 1
    %s18 = ssub.s32 %s12, 2
    %s19 = sadd.s32 %s12, 1
    %s20 = ssub.s32 %s12, %s19
    %p21 = scmp.eq.s32.totalorder %s20, 0
    %s23 = sadd.s32 %s22, 1
    %s24 = scalar_select %p21, %s22, %s23
    %p27 = pneg %p21
    %p28 = scmp.eq.s32.totalorder %s12, 1
    %p29 = por %p27, %p28
    %p30 = scmp.ne.s32.totalorder %s22, %s25
    %p31 = scmp.eq.s32.totalorder %s12, 0
    %p32 = por %p30, %p31
    %p33 = scmp.ne.s32.totalorder %s22, %s25
    %p34 = scmp.eq.s32.totalorder %s17, 1
    %p35 = por %p33, %p34
    %p36 = scmp.ne.s32.totalorder %s25, %s26
    %p37 = scmp.eq.s32.totalorder %s17, 0
    %p38 = por %p36, %p37
    %p39 = scmp.ne.s32.totalorder %s25, %s26
    %p40 = scmp.eq.s32.totalorder %s18, 1
    %p41 = por %p39, %p40
    %p43 = scmp.ne.s32.totalorder %s26, %s42
    %p44 = scmp.eq.s32.totalorder %s18, 0
    %p45 = por %p43, %p44
    %s47 = sadd.s32 %s46, 1
    %p50 = scmp.eq.s32.totalorder %s12, 1
    %p51 = scmp.ne.s32.totalorder %s46, %s48
    %p52 = scmp.eq.s32.totalorder %s12, 0
    %p53 = por %p51, %p52
    %p54 = scmp.ne.s32.totalorder %s46, %s48
    %p55 = scmp.eq.s32.totalorder %s17, 1
    %p56 = por %p54, %p55
    %p57 = scmp.ne.s32.totalorder %s48, %s49
    %p58 = scmp.eq.s32.totalorder %s17, 0
    %p59 = por %p57, %p58
    %p60 = scmp.ne.s32.totalorder %s48, %s49
    %p61 = scmp.eq.s32.totalorder %s18, 1
    %p62 = por %p60, %p61
    %p64 = scmp.ne.s32.totalorder %s49, %s63
    %p65 = scmp.eq.s32.totalorder %s18, 0
    %p66 = por %p64, %p65
    %s68 = sadd.s32 %s67, 1
    %p71 = scmp.eq.s32.totalorder %s12, 1
    %p72 = scmp.ne.s32.totalorder %s67, %s69
    %p73 = scmp.eq.s32.totalorder %s12, 0
    %p74 = por %p72, %p73
    %p75 = scmp.ne.s32.totalorder %s67, %s69
    %p76 = scmp.eq.s32.totalorder %s17, 1
    %p77 = por %p75, %p76
    %p78 = scmp.ne.s32.totalorder %s69, %s70
    %p79 = scmp.eq.s32.totalorder %s17, 0
    %p80 = por %p78, %p79
    %p81 = scmp.ne.s32.totalorder %s69, %s70
    %p82 = scmp.eq.s32.totalorder %s18, 1
    %p83 = por %p81, %p82
    %p85 = scmp.ne.s32.totalorder %s70, %s84
    %p86 = scmp.eq.s32.totalorder %s18, 0
    %p87 = por %p85, %p86
    %s89 = sadd.s32 %s88, 1
    %p92 = scmp.eq.s32.totalorder %s12, 1
    %p93 = scmp.ne.s32.totalorder %s88, %s90
    %p94 = scmp.eq.s32.totalorder %s12, 0
    %p95 = por %p93, %p94
    %p96 = scmp.ne.s32.totalorder %s88, %s90
    %p97 = scmp.eq.s32.totalorder %s17, 1
    %p98 = por %p96, %p97
    %p99 = scmp.ne.s32.totalorder %s90, %s91
    %p100 = scmp.eq.s32.totalorder %s17, 0
    %p101 = por %p99, %p100
    %p102 = scmp.ne.s32.totalorder %s90, %s91
    %p103 = scmp.eq.s32.totalorder %s18, 1
    %p104 = por %p102, %p103
    %p106 = scmp.ne.s32.totalorder %s91, %s105
    %p107 = scmp.eq.s32.totalorder %s18, 0
    %p108 = por %p106, %p107
    %s110 = sadd.s32 %s109, 1
    %p113 = scmp.eq.s32.totalorder %s12, 1
    %p114 = scmp.ne.s32.totalorder %s109, %s111
    %p115 = scmp.eq.s32.totalorder %s12, 0
    %p116 = por %p114, %p115
    %p117 = scmp.ne.s32.totalorder %s109, %s111
    %p118 = scmp.eq.s32.totalorder %s17, 1
    %p119 = por %p117, %p118
    %p120 = scmp.ne.s32.totalorder %s111, %s112
    %p121 = scmp.eq.s32.totalorder %s17, 0
    %p122 = por %p120, %p121
    %p123 = scmp.ne.s32.totalorder %s111, %s112
    %p124 = scmp.eq.s32.totalorder %s18, 1
    %p125 = por %p123, %p124
    %p127 = scmp.ne.s32.totalorder %s112, %s126
    %p128 = scmp.eq.s32.totalorder %s18, 0
    %p129 = por %p127, %p128
    %s131 = sadd.s32 %s130, 1
    %p134 = scmp.eq.s32.totalorder %s12, 1
    %p135 = scmp.ne.s32.totalorder %s130, %s132
    %p136 = scmp.eq.s32.totalorder %s12, 0
    %p137 = por %p135, %p136
    %p138 = scmp.ne.s32.totalorder %s130, %s132
    %p139 = scmp.eq.s32.totalorder %s17, 1
    %p140 = por %p138, %p139
    %p141 = scmp.ne.s32.totalorder %s132, %s133
    %p142 = scmp.eq.s32.totalorder %s17, 0
    %p143 = por %p141, %p142
    %p144 = scmp.ne.s32.totalorder %s132, %s133
    %p145 = scmp.eq.s32.totalorder %s18, 1
    %p146 = por %p144, %p145
    %p148 = scmp.ne.s32.totalorder %s133, %s147
    %p149 = scmp.eq.s32.totalorder %s18, 0
    %p150 = por %p148, %p149
    %s151 = ssub.s32 %s12, %s19
    %p152 = scmp.eq.s32.totalorder %s151, 0
    %s154 = sadd.s32 %s153, 1
    %s155 = scalar_select %p152, %s153, %s154
    %p158 = pneg %p152
    %p159 = scmp.eq.s32.totalorder %s12, 1
    %p160 = por %p158, %p159
    %p161 = scmp.ne.s32.totalorder %s153, %s156
    %p162 = scmp.eq.s32.totalorder %s12, 0
    %p163 = por %p161, %p162
    %p164 = scmp.ne.s32.totalorder %s153, %s156
    %p165 = scmp.eq.s32.totalorder %s17, 1
    %p166 = por %p164, %p165
    %p167 = scmp.ne.s32.totalorder %s156, %s157
    %p168 = scmp.eq.s32.totalorder %s17, 0
    %p169 = por %p167, %p168
    %p170 = scmp.ne.s32.totalorder %s156, %s157
    %p171 = scmp.eq.s32.totalorder %s18, 1
    %p172 = por %p170, %p171
    %p174 = scmp.ne.s32.totalorder %s157, %s173
    %p175 = scmp.eq.s32.totalorder %s18, 0
    %p176 = por %p174, %p175
    %p177 = scmp.le.s32.totalorder 1, %s12
    %p178 = scmp.lt.s32.totalorder %s12, 3
    %p179 = pnand %p177, %p178
    %p180 = pneg %p179
    // Predicated region
    $region9: #{_lambda_.1} parent=5 // pred_check
      _
    $region10: #{_lambda_.1} parent=5 // pred_check_branch
      %182 = sbr.rel (%p179) target = $region12
    $region11: #{_lambda_.1} parent=5 // pred_region
      %s183 = ssub.s32 %s12, 1
      // Predicated region
      $region13: #{_lambda_.1} parent=11 // pred_check
        %p184 = pneg %p59
      $region14: #{_lambda_.1} parent=11 // pred_check_branch
        %186 = sbr.rel (%p184) target = $region16
      $region15: #{_lambda_.1} parent=11 // pred_region
        _
      $region16: #{_lambda_.1} parent=11 // pred_fallthru
        _
      // Predicated region
      $region17: #{_lambda_.1} parent=11 // pred_check
        %p187 = pneg %p80
      $region18: #{_lambda_.1} parent=11 // pred_check_branch
        %189 = sbr.rel (%p187) target = $region20
      $region19: #{_lambda_.1} parent=11 // pred_region
        _
      $region20: #{_lambda_.1} parent=11 // pred_fallthru
        _
      // Predicated region
      $region21: #{_lambda_.1} parent=11 // pred_check
        %p190 = pneg %p101
      $region22: #{_lambda_.1} parent=11 // pred_check_branch
        %192 = sbr.rel (%p190) target = $region24
      $region23: #{_lambda_.1} parent=11 // pred_region
        _
      $region24: #{_lambda_.1} parent=11 // pred_fallthru
        _
      // Predicated region
      $region25: #{_lambda_.1} parent=11 // pred_check
        %p193 = pneg %p122
      $region26: #{_lambda_.1} parent=11 // pred_check_branch
        %195 = sbr.rel (%p193) target = $region28
      $region27: #{_lambda_.1} parent=11 // pred_region
        _
      $region28: #{_lambda_.1} parent=11 // pred_fallthru
        _
      // Predicated region
      $region29: #{_lambda_.1} parent=11 // pred_check
        %p196 = pneg %p143
      $region30: #{_lambda_.1} parent=11 // pred_check_branch
        %198 = sbr.rel (%p196) target = $region32
      $region31: #{_lambda_.1} parent=11 // pred_region
        _
      $region32: #{_lambda_.1} parent=11 // pred_fallthru
        _
    $region12: #{_lambda_.1} parent=5 // pred_fallthru
      _
    %p199 = scmp.lt.s32.totalorder %s12, 2
    // Predicated region
    $region33: #{_lambda_.1} parent=5 // pred_check
      %p200 = pneg %p199
    $region34: #{_lambda_.1} parent=5 // pred_check_branch
      %202 = sbr.rel (%p200) target = $region36
    $region35: #{_lambda_.1} parent=5 // pred_region
      // Predicated region
      $region37: #{_lambda_.1} parent=35 // pred_check
        %p203 = pneg %p32
      $region38: #{_lambda_.1} parent=35 // pred_check_branch
        %205 = sbr.rel (%p203) target = $region40
      $region39: #{_lambda_.1} parent=35 // pred_region
        %p206 = scmp.lt.s32.totalorder %s12, 1
        %s207 = scalar_select %p206, %s12, 1
        %s208 = smul.addr %s207, 2
        %s209 = smul.addr %s208, 8
        %s210 = scalar_lea.vmem %s0, %s209
      $region40: #{_lambda_.1} parent=35 // pred_fallthru
        _
    $region36: #{_lambda_.1} parent=5 // pred_fallthru
      _
    %p211 = scmp.le.s32.totalorder 1, %s12
    %p212 = scmp.lt.s32.totalorder %s12, 3
    %p213 = pnand %p211, %p212
    %p214 = pneg %p213
    // Predicated region
    $region41: #{_lambda_.1} parent=5 // pred_check
      _
    $region42: #{_lambda_.1} parent=5 // pred_check_branch
      %216 = sbr.rel (%p213) target = $region44
    $region43: #{_lambda_.1} parent=5 // pred_region
      %s217 = ssub.s32 %s12, 1
      %p218 = scmp.lt.s32.totalorder %s17, 1
      %s219 = scalar_select %p218, %s17, 1
      %s220 = smul.addr %s219, 2
      %s221 = smul.addr %s220, 8
      %s222 = scalar_lea.vmem %s0, %s221
      %p223 = pneg %p38
      %p224 = pneg %p35
      %p225 = pneg %p59
      %p226 = pneg %p56
      %p227 = pneg %p80
      %p228 = pneg %p77
      %p229 = pneg %p101
      %p230 = pneg %p98
      %p231 = pneg %p122
      %p232 = pneg %p119
      %p233 = pneg %p143
      %p234 = pneg %p140
      %p235 = pneg %p169
      %p236 = pneg %p166
      %p237 = scmp.lt.s32.totalorder %s17, 1
      %s238 = scalar_select %p237, %s17, 1
      %s239 = smul.addr %s238, 2
      %s240 = smul.addr %s239, 8
      %s241 = scalar_lea.vmem %s6, %s240
      %p242 = scmp.lt.s32.totalorder %s17, 1
      %s243 = scalar_select %p242, %s17, 1
      %s244 = smul.addr %s243, 2
      %s245 = smul.addr %s244, 8
      %s246 = scalar_lea.vmem %s0, %s245
      %p247 = scmp.lt.s32.totalorder %s17, 1
      %s248 = scalar_select %p247, %s17, 1
      %s249 = smul.addr %s248, 2
      %s250 = smul.addr %s249, 8
      %s251 = scalar_lea.vmem %s6, %s250
      %v252 = vld [vmem:[%s246] sm:$0xff]
      %v253 = vld [vmem:[%s246 + $0x8] sm:$0xff]
      %v254 = vld [vmem:[%s3] sm:$0xff]
      %255 = vrot.lane.b32.xlu0 %v252, 17
      %v256 = vpop.permute.xlu0 %255
      %257 = vrot.lane.b32.xlu0 %v253, 17
      %v258 = vpop.permute.xlu0 %257
      %v259 = vlaneseq
      %v260 = vand.u32 %v259, 127
      %vm261 = vcmp.lt.s32.totalorder %v260, 17
      %v262 = vsel %vm261, %v256, %v258
      %v263 = vsel %vm261, %v258, %v256
      %v264 = vld [vmem:[%s1] sm:$0x3]
      %v266 = vlaneseq
      %v267 = vshrl.u32 %v266, 7
      %v268 = vsub.s32 0, %v267
      %v269 = vrot.slane %v264, %v268
      %v270 = vlaneseq
      %v271 = vshrl.u32 %v270, 7
      %v272 = vsub.s32 1, %v271
      %v273 = vrot.slane %v264, %v272
      %v276 = vmul.f32 %v263, %v269
      %v277 = vmul.f32 %v262, %v273
      %278 = vrot.lane.b32.xlu0 %v252, 16
      %v279 = vpop.permute.xlu0 %278
      %280 = vrot.lane.b32.xlu0 %v253, 16
      %v281 = vpop.permute.xlu0 %280
      %vm282 = vcmp.lt.s32.totalorder %v260, 16
      %v283 = vsel %vm282, %v279, %v281
      %v284 = vsel %vm282, %v281, %v279
      %s285 = scalar_lea.vmem %s1, 2
      %v286 = vld [vmem:[%s285] sm:$0x3]
      %v288 = vlaneseq
      %v289 = vshrl.u32 %v288, 7
      %v290 = vsub.s32 0, %v289
      %v291 = vrot.slane %v286, %v290
      %v292 = vlaneseq
      %v293 = vshrl.u32 %v292, 7
      %v294 = vsub.s32 1, %v293
      %v295 = vrot.slane %v286, %v294
      %v298 = vmul.f32 %v284, %v291
      %v299 = vmul.f32 %v283, %v295
      %300 = vrot.lane.b32.xlu0 %v252, 15
      %v301 = vpop.permute.xlu0 %300
      %302 = vrot.lane.b32.xlu0 %v253, 15
      %v303 = vpop.permute.xlu0 %302
      %vm304 = vcmp.lt.s32.totalorder %v260, 15
      %v305 = vsel %vm304, %v301, %v303
      %v306 = vsel %vm304, %v303, %v301
      %s307 = scalar_lea.vmem %s1, 4
      %v308 = vld [vmem:[%s307] sm:$0x3]
      %v310 = vlaneseq
      %v311 = vshrl.u32 %v310, 7
      %v312 = vsub.s32 0, %v311
      %v313 = vrot.slane %v308, %v312
      %v314 = vlaneseq
      %v315 = vshrl.u32 %v314, 7
      %v316 = vsub.s32 1, %v315
      %v317 = vrot.slane %v308, %v316
      %v320 = vmul.f32 %v306, %v313
      %v321 = vmul.f32 %v305, %v317
      %v322 = vld [vmem:[%s2] sm:$0xff]
      %vm323 = vcmask 195584
      %v325 = vsel %vm323, %v322, 0
      %327 = vmatprep.subr.mxu0 %v277
      %328 = vmatpush1.msra.mxu0 %v276
      %329 = vmatprep.subr.mxu0 %v299
      %330 = vmatpush1.msra.mxu0 %v298
      %331 = vmatprep.subr.mxu0 %v321
      %332 = vmatpush1.msra.mxu0 %v320
      %333 = vmatprep.subr.mxu0 0.0
      %334 = vmatpush1.msra.mxu0 0.0
      %335 = vmatprep.subr.mxu0 0.0
      %336 = vmatpush1.msra.mxu0 0.0
      %337 = vmatprep.subr.mxu0 0.0
      %338 = vmatpush1.msra.mxu0 0.0
      %339 = vmatprep.subr.mxu0 0.0
      %340 = vmatpush1.msra.mxu0 0.0
      %341 = vmatprep.subr.mxu0 0.0
      %342 = vmatpush1.msra.mxu0 0.0
      %343 = vmatprep.subr.mxu0 0.0
      %344 = vmatpush1.msra.mxu0 0.0
      %345 = vmatprep.subr.mxu0 0.0
      %346 = vmatpush1.msra.mxu0 0.0
      %347 = vmatprep.subr.mxu0 0.0
      %348 = vmatpush1.msra.mxu0 0.0
      %349 = vmatprep.subr.mxu0 0.0
      %350 = vmatpush1.msra.mxu0 0.0
      %351 = vmatprep.subr.mxu0 0.0
      %352 = vmatpush1.msra.mxu0 0.0
      %353 = vmatprep.subr.mxu0 0.0
      %354 = vmatpush1.msra.mxu0 0.0
      %355 = vmatprep.subr.mxu0 0.0
      %356 = vmatpush1.msra.mxu0 0.0
      %357 = vmatprep.subr.mxu0 0.0
      %358 = vmatpush1.msra.mxu0 0.0
      %359 = vmatprep.subr.mxu0 0.0
      %360 = vmatpush1.msra.mxu0 0.0
      %361 = vmatprep.subr.mxu0 0.0
      %362 = vmatpush1.msra.mxu0 0.0
      %363 = vmatprep.subr.mxu0 0.0
      %364 = vmatpush1.msra.mxu0 0.0
      %365 = vmatprep.subr.mxu0 0.0
      %366 = vmatpush1.msra.mxu0 0.0
      %367 = vmatprep.subr.mxu0 0.0
      %368 = vmatpush1.msra.mxu0 0.0
      %369 = vmatprep.subr.mxu0 0.0
      %370 = vmatpush1.msra.mxu0 0.0
      %371 = vmatprep.subr.mxu0 0.0
      %372 = vmatpush1.msra.mxu0 0.0
      %373 = vmatprep.subr.mxu0 0.0
      %374 = vmatpush1.msra.mxu0 0.0
      %375 = vmatprep.subr.mxu0 0.0
      %376 = vmatpush1.msra.mxu0 0.0
      %377 = vmatprep.subr.mxu0 0.0
      %378 = vmatpush1.msra.mxu0 0.0
      %379 = vmatprep.subr.mxu0 0.0
      %380 = vmatpush1.msra.mxu0 0.0
      %381 = vmatprep.subr.mxu0 0.0
      %382 = vmatpush1.msra.mxu0 0.0
      %383 = vmatprep.subr.mxu0 0.0
      %384 = vmatpush1.msra.mxu0 0.0
      %385 = vmatprep.subr.mxu0 0.0
      %386 = vmatpush1.msra.mxu0 0.0
      %387 = vmatprep.subr.mxu0 0.0
      %388 = vmatpush1.msra.mxu0 0.0
      %389 = vmatprep.subr.mxu0 0.0
      %390 = vmatpush1.msra.mxu0 0.0
      %391 = vmatprep.mubr.f32.mxu0 0.0
      %392 = vmatmul.mubr.f32.gmra.mrb[0].mxu0 %v325
      %v393 = vpop.f32.mrb[0].mxu0
      %v394 = vadd.f32 0.0, %v393
      %v395 = vpop.f32.mrb[0].mxu0
      %v396 = vadd.f32 0.0, %v395
      %397 = vdwg.mxu0
      %399 = vset.pattern.permute.xlu0 0
      %400 = vperm.xlu0 %399, %v254
      %v401 = vpop.permute.xlu0 %400
      %v403 = vadd.f32 %v401, %v394
      %v404 = vadd.f32 %v401, %v396
      %405 = vrot.lane.b32.xlu0 %v252, 1
      %v406 = vpop.permute.xlu0 %405
      %407 = vrot.lane.b32.xlu0 %v253, 1
      %v408 = vpop.permute.xlu0 %407
      %vm409 = vcmp.lt.s32.totalorder %v260, 1
      %v410 = vsel %vm409, %v406, %v408
      %v411 = vsel %vm409, %v408, %v406
      %s412 = scalar_lea.vmem %s1, 6
      %v413 = vld [vmem:[%s412] sm:$0x3]
      %v415 = vlaneseq
      %v416 = vshrl.u32 %v415, 7
      %v417 = vsub.s32 0, %v416
      %v418 = vrot.slane %v413, %v417
      %v419 = vlaneseq
      %v420 = vshrl.u32 %v419, 7
      %v421 = vsub.s32 1, %v420
      %v422 = vrot.slane %v413, %v421
      %v425 = vmul.f32 %v411, %v418
      %v426 = vmul.f32 %v410, %v422
      %427 = vrot.lane.b32.xlu0 %v252, 127
      %v428 = vpop.permute.xlu0 %427
      %429 = vrot.lane.b32.xlu0 %v253, 127
      %v430 = vpop.permute.xlu0 %429
      %vm431 = vcmp.lt.s32.totalorder %v260, 127
      %v432 = vsel %vm431, %v428, %v430
      %v433 = vsel %vm431, %v430, %v428
      %s434 = scalar_lea.vmem %s1, 10
      %v435 = vld [vmem:[%s434] sm:$0x3]
      %v437 = vlaneseq
      %v438 = vshrl.u32 %v437, 7
      %v439 = vsub.s32 0, %v438
      %v440 = vrot.slane %v435, %v439
      %v441 = vlaneseq
      %v442 = vshrl.u32 %v441, 7
      %v443 = vsub.s32 1, %v442
      %v444 = vrot.slane %v435, %v443
      %v447 = vmul.f32 %v432, %v440
      %v448 = vmul.f32 %v433, %v444
      %s449 = scalar_lea.vmem %s2, 8
      %v450 = vld [vmem:[%s449] sm:$0xff]
      %v452 = vsel %vm323, %v450, 0
      %454 = vmatprep.subr.mxu0 %v426
      %455 = vmatpush1.msra.mxu0 %v425
      %456 = vmatprep.subr.mxu0 %v253
      %457 = vmatpush1.msra.mxu0 %v252
      %458 = vmatprep.subr.mxu0 %v448
      %459 = vmatpush1.msra.mxu0 %v447
      %460 = vmatprep.subr.mxu0 0.0
      %461 = vmatpush1.msra.mxu0 0.0
      %462 = vmatprep.subr.mxu0 0.0
      %463 = vmatpush1.msra.mxu0 0.0
      %464 = vmatprep.subr.mxu0 0.0
      %465 = vmatpush1.msra.mxu0 0.0
      %466 = vmatprep.subr.mxu0 0.0
      %467 = vmatpush1.msra.mxu0 0.0
      %468 = vmatprep.subr.mxu0 0.0
      %469 = vmatpush1.msra.mxu0 0.0
      %470 = vmatprep.subr.mxu0 0.0
      %471 = vmatpush1.msra.mxu0 0.0
      %472 = vmatprep.subr.mxu0 0.0
      %473 = vmatpush1.msra.mxu0 0.0
      %474 = vmatprep.subr.mxu0 0.0
      %475 = vmatpush1.msra.mxu0 0.0
      %476 = vmatprep.subr.mxu0 0.0
      %477 = vmatpush1.msra.mxu0 0.0
      %478 = vmatprep.subr.mxu0 0.0
      %479 = vmatpush1.msra.mxu0 0.0
      %480 = vmatprep.subr.mxu0 0.0
      %481 = vmatpush1.msra.mxu0 0.0
      %482 = vmatprep.subr.mxu0 0.0
      %483 = vmatpush1.msra.mxu0 0.0
      %484 = vmatprep.subr.mxu0 0.0
      %485 = vmatpush1.msra.mxu0 0.0
      %486 = vmatprep.subr.mxu0 0.0
      %487 = vmatpush1.msra.mxu0 0.0
      %488 = vmatprep.subr.mxu0 0.0
      %489 = vmatpush1.msra.mxu0 0.0
      %490 = vmatprep.subr.mxu0 0.0
      %491 = vmatpush1.msra.mxu0 0.0
      %492 = vmatprep.subr.mxu0 0.0
      %493 = vmatpush1.msra.mxu0 0.0
      %494 = vmatprep.subr.mxu0 0.0
      %495 = vmatpush1.msra.mxu0 0.0
      %496 = vmatprep.subr.mxu0 0.0
      %497 = vmatpush1.msra.mxu0 0.0
      %498 = vmatprep.subr.mxu0 0.0
      %499 = vmatpush1.msra.mxu0 0.0
      %500 = vmatprep.subr.mxu0 0.0
      %501 = vmatpush1.msra.mxu0 0.0
      %502 = vmatprep.subr.mxu0 0.0
      %503 = vmatpush1.msra.mxu0 0.0
      %504 = vmatprep.subr.mxu0 0.0
      %505 = vmatpush1.msra.mxu0 0.0
      %506 = vmatprep.subr.mxu0 0.0
      %507 = vmatpush1.msra.mxu0 0.0
      %508 = vmatprep.subr.mxu0 0.0
      %509 = vmatpush1.msra.mxu0 0.0
      %510 = vmatprep.subr.mxu0 0.0
      %511 = vmatpush1.msra.mxu0 0.0
      %512 = vmatprep.subr.mxu0 0.0
      %513 = vmatpush1.msra.mxu0 0.0
      %514 = vmatprep.subr.mxu0 0.0
      %515 = vmatpush1.msra.mxu0 0.0
      %516 = vmatprep.subr.mxu0 0.0
      %517 = vmatpush1.msra.mxu0 0.0
      %518 = vmatprep.mubr.f32.mxu0 0.0
      %519 = vmatmul.mubr.f32.gmra.mrb[0].mxu0 %v452
      %v520 = vpop.f32.mrb[0].mxu0
      %v521 = vadd.f32 0.0, %v520
      %v522 = vpop.f32.mrb[0].mxu0
      %v523 = vadd.f32 0.0, %v522
      %524 = vdwg.mxu0
      %v525 = vadd.f32 %v403, %v521
      %v526 = vadd.f32 %v404, %v523
      %527 = vrot.lane.b32.xlu0 %v252, 113
      %v528 = vpop.permute.xlu0 %527
      %529 = vrot.lane.b32.xlu0 %v253, 113
      %v530 = vpop.permute.xlu0 %529
      %vm531 = vcmp.lt.s32.totalorder %v260, 113
      %v532 = vsel %vm531, %v528, %v530
      %v533 = vsel %vm531, %v530, %v528
      %s534 = scalar_lea.vmem %s1, 12
      %v535 = vld [vmem:[%s534] sm:$0x3]
      %v537 = vlaneseq
      %v538 = vshrl.u32 %v537, 7
      %v539 = vsub.s32 0, %v538
      %v540 = vrot.slane %v535, %v539
      %v541 = vlaneseq
      %v542 = vshrl.u32 %v541, 7
      %v543 = vsub.s32 1, %v542
      %v544 = vrot.slane %v535, %v543
      %v547 = vmul.f32 %v532, %v540
      %v548 = vmul.f32 %v533, %v544
      %549 = vrot.lane.b32.xlu0 %v252, 112
      %v550 = vpop.permute.xlu0 %549
      %551 = vrot.lane.b32.xlu0 %v253, 112
      %v552 = vpop.permute.xlu0 %551
      %vm553 = vcmp.lt.s32.totalorder %v260, 112
      %v554 = vsel %vm553, %v550, %v552
      %v555 = vsel %vm553, %v552, %v550
      %s556 = scalar_lea.vmem %s1, 14
      %v557 = vld [vmem:[%s556] sm:$0x3]
      %v559 = vlaneseq
      %v560 = vshrl.u32 %v559, 7
      %v561 = vsub.s32 0, %v560
      %v562 = vrot.slane %v557, %v561
      %v563 = vlaneseq
      %v564 = vshrl.u32 %v563, 7
      %v565 = vsub.s32 1, %v564
      %v566 = vrot.slane %v557, %v565
      %v569 = vmul.f32 %v554, %v562
      %v570 = vmul.f32 %v555, %v566
      %571 = vrot.lane.b32.xlu0 %v252, 111
      %v572 = vpop.permute.xlu0 %571
      %573 = vrot.lane.b32.xlu0 %v253, 111
      %v574 = vpop.permute.xlu0 %573
      %vm575 = vcmp.lt.s32.totalorder %v260, 111
      %v576 = vsel %vm575, %v572, %v574
      %v577 = vsel %vm575, %v574, %v572
      %s578 = scalar_lea.vmem %s1, 16
      %v579 = vld [vmem:[%s578] sm:$0x3]
      %v581 = vlaneseq
      %v582 = vshrl.u32 %v581, 7
      %v583 = vsub.s32 0, %v582
      %v584 = vrot.slane %v579, %v583
      %v585 = vlaneseq
      %v586 = vshrl.u32 %v585, 7
      %v587 = vsub.s32 1, %v586
      %v588 = vrot.slane %v579, %v587
      %v591 = vmul.f32 %v576, %v584
      %v592 = vmul.f32 %v577, %v588
      %s593 = scalar_lea.vmem %s2, 16
      %v594 = vld [vmem:[%s593] sm:$0xff]
      %v596 = vsel %vm323, %v594, 0
      %598 = vmatprep.subr.mxu0 %v548
      %599 = vmatpush1.msra.mxu0 %v547
      %600 = vmatprep.subr.mxu0 %v570
      %601 = vmatpush1.msra.mxu0 %v569
      %602 = vmatprep.subr.mxu0 %v592
      %603 = vmatpush1.msra.mxu0 %v591
      %604 = vmatprep.subr.mxu0 0.0
      %605 = vmatpush1.msra.mxu0 0.0
      %606 = vmatprep.subr.mxu0 0.0
      %607 = vmatpush1.msra.mxu0 0.0
      %608 = vmatprep.subr.mxu0 0.0
      %609 = vmatpush1.msra.mxu0 0.0
      %610 = vmatprep.subr.mxu0 0.0
      %611 = vmatpush1.msra.mxu0 0.0
      %612 = vmatprep.subr.mxu0 0.0
      %613 = vmatpush1.msra.mxu0 0.0
      %614 = vmatprep.subr.mxu0 0.0
      %615 = vmatpush1.msra.mxu0 0.0
      %616 = vmatprep.subr.mxu0 0.0
      %617 = vmatpush1.msra.mxu0 0.0
      %618 = vmatprep.subr.mxu0 0.0
      %619 = vmatpush1.msra.mxu0 0.0
      %620 = vmatprep.subr.mxu0 0.0
      %621 = vmatpush1.msra.mxu0 0.0
      %622 = vmatprep.subr.mxu0 0.0
      %623 = vmatpush1.msra.mxu0 0.0
      %624 = vmatprep.subr.mxu0 0.0
      %625 = vmatpush1.msra.mxu0 0.0
      %626 = vmatprep.subr.mxu0 0.0
      %627 = vmatpush1.msra.mxu0 0.0
      %628 = vmatprep.subr.mxu0 0.0
      %629 = vmatpush1.msra.mxu0 0.0
      %630 = vmatprep.subr.mxu0 0.0
      %631 = vmatpush1.msra.mxu0 0.0
      %632 = vmatprep.subr.mxu0 0.0
      %633 = vmatpush1.msra.mxu0 0.0
      %634 = vmatprep.subr.mxu0 0.0
      %635 = vmatpush1.msra.mxu0 0.0
      %636 = vmatprep.subr.mxu0 0.0
      %637 = vmatpush1.msra.mxu0 0.0
      %638 = vmatprep.subr.mxu0 0.0
      %639 = vmatpush1.msra.mxu0 0.0
      %640 = vmatprep.subr.mxu0 0.0
      %641 = vmatpush1.msra.mxu0 0.0
      %642 = vmatprep.subr.mxu0 0.0
      %643 = vmatpush1.msra.mxu0 0.0
      %644 = vmatprep.subr.mxu0 0.0
      %645 = vmatpush1.msra.mxu0 0.0
      %646 = vmatprep.subr.mxu0 0.0
      %647 = vmatpush1.msra.mxu0 0.0
      %648 = vmatprep.subr.mxu0 0.0
      %649 = vmatpush1.msra.mxu0 0.0
      %650 = vmatprep.subr.mxu0 0.0
      %651 = vmatpush1.msra.mxu0 0.0
      %652 = vmatprep.subr.mxu0 0.0
      %653 = vmatpush1.msra.mxu0 0.0
      %654 = vmatprep.subr.mxu0 0.0
      %655 = vmatpush1.msra.mxu0 0.0
      %656 = vmatprep.subr.mxu0 0.0
      %657 = vmatpush1.msra.mxu0 0.0
      %658 = vmatprep.subr.mxu0 0.0
      %659 = vmatpush1.msra.mxu0 0.0
      %660 = vmatprep.subr.mxu0 0.0
      %661 = vmatpush1.msra.mxu0 0.0
      %662 = vmatprep.mubr.f32.mxu0 0.0
      %663 = vmatmul.mubr.f32.gmra.mrb[0].mxu0 %v596
      %v664 = vpop.f32.mrb[0].mxu0
      %v665 = vadd.f32 0.0, %v664
      %v666 = vpop.f32.mrb[0].mxu0
      %v667 = vadd.f32 0.0, %v666
      %668 = vdwg.mxu0
      %v669 = vadd.f32 %v525, %v665
      %v670 = vadd.f32 %v526, %v667
      %v671 = vxor.u32 %v669, 2147483648
      %v672 = vxor.u32 %v670, 2147483648
      %v673 = vmul.f32 %v671, 1.442695
      %v674 = vpow.pop %v673
      %v675 = vmul.f32 %v672, 1.442695
      %v676 = vpow.pop %v675
      %v677 = vadd.f32 %v674, 1.0
      %v678 = vadd.f32 %v676, 1.0
      %v679 = vrcp.pop %v677
      %v680 = vmul.f32 1.0, %v679
      %v681 = vrcp.pop %v678
      %v682 = vmul.f32 1.0, %v681
      %v683 = vmul.f32 %v669, %v680
      %v684 = vmul.f32 %v670, %v682
      %v685 = vld [vmem:[%s5] sm:$0xff]
      %686 = vrot.lane.b32.xlu0 %v683, 17
      %v687 = vpop.permute.xlu0 %686
      %688 = vrot.lane.b32.xlu0 %v684, 17
      %v689 = vpop.permute.xlu0 %688
      %v690 = vsel %vm261, %v687, %v689
      %v691 = vsel %vm261, %v689, %v687
      %v692 = vmul.f32 %v691, %v269
      %v693 = vmul.f32 %v690, %v273
      %694 = vrot.lane.b32.xlu0 %v683, 16
      %v695 = vpop.permute.xlu0 %694
      %696 = vrot.lane.b32.xlu0 %v684, 16
      %v697 = vpop.permute.xlu0 %696
      %v698 = vsel %vm282, %v695, %v697
      %v699 = vsel %vm282, %v697, %v695
      %v700 = vmul.f32 %v699, %v291
      %v701 = vmul.f32 %v698, %v295
      %702 = vrot.lane.b32.xlu0 %v683, 15
      %v703 = vpop.permute.xlu0 %702
      %704 = vrot.lane.b32.xlu0 %v684, 15
      %v705 = vpop.permute.xlu0 %704
      %v706 = vsel %vm304, %v703, %v705
      %v707 = vsel %vm304, %v705, %v703
      %v708 = vmul.f32 %v707, %v313
      %v709 = vmul.f32 %v706, %v317
      %v710 = vld [vmem:[%s4] sm:$0xff]
      %v712 = vsel %vm323, %v710, 0
      %714 = vmatprep.subr.mxu0 %v693
      %715 = vmatpush1.msra.mxu0 %v692
      %716 = vmatprep.subr.mxu0 %v701
      %717 = vmatpush1.msra.mxu0 %v700
      %718 = vmatprep.subr.mxu0 %v709
      %719 = vmatpush1.msra.mxu0 %v708
      %720 = vmatprep.subr.mxu0 0.0
      %721 = vmatpush1.msra.mxu0 0.0
      %722 = vmatprep.subr.mxu0 0.0
      %723 = vmatpush1.msra.mxu0 0.0
      %724 = vmatprep.subr.mxu0 0.0
      %725 = vmatpush1.msra.mxu0 0.0
      %726 = vmatprep.subr.mxu0 0.0
      %727 = vmatpush1.msra.mxu0 0.0
      %728 = vmatprep.subr.mxu0 0.0
      %729 = vmatpush1.msra.mxu0 0.0
      %730 = vmatprep.subr.mxu0 0.0
      %731 = vmatpush1.msra.mxu0 0.0
      %732 = vmatprep.subr.mxu0 0.0
      %733 = vmatpush1.msra.mxu0 0.0
      %734 = vmatprep.subr.mxu0 0.0
      %735 = vmatpush1.msra.mxu0 0.0
      %736 = vmatprep.subr.mxu0 0.0
      %737 = vmatpush1.msra.mxu0 0.0
      %738 = vmatprep.subr.mxu0 0.0
      %739 = vmatpush1.msra.mxu0 0.0
      %740 = vmatprep.subr.mxu0 0.0
      %741 = vmatpush1.msra.mxu0 0.0
      %742 = vmatprep.subr.mxu0 0.0
      %743 = vmatpush1.msra.mxu0 0.0
      %744 = vmatprep.subr.mxu0 0.0
      %745 = vmatpush1.msra.mxu0 0.0
      %746 = vmatprep.subr.mxu0 0.0
      %747 = vmatpush1.msra.mxu0 0.0
      %748 = vmatprep.subr.mxu0 0.0
      %749 = vmatpush1.msra.mxu0 0.0
      %750 = vmatprep.subr.mxu0 0.0
      %751 = vmatpush1.msra.mxu0 0.0
      %752 = vmatprep.subr.mxu0 0.0
      %753 = vmatpush1.msra.mxu0 0.0
      %754 = vmatprep.subr.mxu0 0.0
      %755 = vmatpush1.msra.mxu0 0.0
      %756 = vmatprep.subr.mxu0 0.0
      %757 = vmatpush1.msra.mxu0 0.0
      %758 = vmatprep.subr.mxu0 0.0
      %759 = vmatpush1.msra.mxu0 0.0
      %760 = vmatprep.subr.mxu0 0.0
      %761 = vmatpush1.msra.mxu0 0.0
      %762 = vmatprep.subr.mxu0 0.0
      %763 = vmatpush1.msra.mxu0 0.0
      %764 = vmatprep.subr.mxu0 0.0
      %765 = vmatpush1.msra.mxu0 0.0
      %766 = vmatprep.subr.mxu0 0.0
      %767 = vmatpush1.msra.mxu0 0.0
      %768 = vmatprep.subr.mxu0 0.0
      %769 = vmatpush1.msra.mxu0 0.0
      %770 = vmatprep.subr.mxu0 0.0
      %771 = vmatpush1.msra.mxu0 0.0
      %772 = vmatprep.subr.mxu0 0.0
      %773 = vmatpush1.msra.mxu0 0.0
      %774 = vmatprep.subr.mxu0 0.0
      %775 = vmatpush1.msra.mxu0 0.0
      %776 = vmatprep.subr.mxu0 0.0
      %777 = vmatpush1.msra.mxu0 0.0
      %778 = vmatprep.mubr.f32.mxu0 0.0
      %779 = vmatmul.mubr.f32.gmra.mrb[0].mxu0 %v712
      %v780 = vpop.f32.mrb[0].mxu0
      %v781 = vadd.f32 0.0, %v780
      %v782 = vpop.f32.mrb[0].mxu0
      %v783 = vadd.f32 0.0, %v782
      %784 = vdwg.mxu0
      %786 = vset.pattern.permute.xlu0 0
      %787 = vperm.xlu0 %786, %v685
      %v788 = vpop.permute.xlu0 %787
      %v790 = vadd.f32 %v788, %v781
      %v791 = vadd.f32 %v788, %v783
      %792 = vrot.lane.b32.xlu0 %v683, 1
      %v793 = vpop.permute.xlu0 %792
      %794 = vrot.lane.b32.xlu0 %v684, 1
      %v795 = vpop.permute.xlu0 %794
      %v796 = vsel %vm409, %v793, %v795
      %v797 = vsel %vm409, %v795, %v793
      %v798 = vmul.f32 %v797, %v418
      %v799 = vmul.f32 %v796, %v422
      %800 = vrot.lane.b32.xlu0 %v683, 127
      %v801 = vpop.permute.xlu0 %800
      %802 = vrot.lane.b32.xlu0 %v684, 127
      %v803 = vpop.permute.xlu0 %802
      %v804 = vsel %vm431, %v801, %v803
      %v805 = vsel %vm431, %v803, %v801
      %v806 = vmul.f32 %v804, %v440
      %v807 = vmul.f32 %v805, %v444
      %s808 = scalar_lea.vmem %s4, 8
      %v809 = vld [vmem:[%s808] sm:$0xff]
      %v811 = vsel %vm323, %v809, 0
      %813 = vmatprep.subr.mxu0 %v799
      %814 = vmatpush1.msra.mxu0 %v798
      %815 = vmatprep.subr.mxu0 %v684
      %816 = vmatpush1.msra.mxu0 %v683
      %817 = vmatprep.subr.mxu0 %v807
      %818 = vmatpush1.msra.mxu0 %v806
      %819 = vmatprep.subr.mxu0 0.0
      %820 = vmatpush1.msra.mxu0 0.0
      %821 = vmatprep.subr.mxu0 0.0
      %822 = vmatpush1.msra.mxu0 0.0
      %823 = vmatprep.subr.mxu0 0.0
      %824 = vmatpush1.msra.mxu0 0.0
      %825 = vmatprep.subr.mxu0 0.0
      %826 = vmatpush1.msra.mxu0 0.0
      %827 = vmatprep.subr.mxu0 0.0
      %828 = vmatpush1.msra.mxu0 0.0
      %829 = vmatprep.subr.mxu0 0.0
      %830 = vmatpush1.msra.mxu0 0.0
      %831 = vmatprep.subr.mxu0 0.0
      %832 = vmatpush1.msra.mxu0 0.0
      %833 = vmatprep.subr.mxu0 0.0
      %834 = vmatpush1.msra.mxu0 0.0
      %835 = vmatprep.subr.mxu0 0.0
      %836 = vmatpush1.msra.mxu0 0.0
      %837 = vmatprep.subr.mxu0 0.0
      %838 = vmatpush1.msra.mxu0 0.0
      %839 = vmatprep.subr.mxu0 0.0
      %840 = vmatpush1.msra.mxu0 0.0
      %841 = vmatprep.subr.mxu0 0.0
      %842 = vmatpush1.msra.mxu0 0.0
      %843 = vmatprep.subr.mxu0 0.0
      %844 = vmatpush1.msra.mxu0 0.0
      %845 = vmatprep.subr.mxu0 0.0
      %846 = vmatpush1.msra.mxu0 0.0
      %847 = vmatprep.subr.mxu0 0.0
      %848 = vmatpush1.msra.mxu0 0.0
      %849 = vmatprep.subr.mxu0 0.0
      %850 = vmatpush1.msra.mxu0 0.0
      %851 = vmatprep.subr.mxu0 0.0
      %852 = vmatpush1.msra.mxu0 0.0
      %853 = vmatprep.subr.mxu0 0.0
      %854 = vmatpush1.msra.mxu0 0.0
      %855 = vmatprep.subr.mxu0 0.0
      %856 = vmatpush1.msra.mxu0 0.0
      %857 = vmatprep.subr.mxu0 0.0
      %858 = vmatpush1.msra.mxu0 0.0
      %859 = vmatprep.subr.mxu0 0.0
      %860 = vmatpush1.msra.mxu0 0.0
      %861 = vmatprep.subr.mxu0 0.0
      %862 = vmatpush1.msra.mxu0 0.0
      %863 = vmatprep.subr.mxu0 0.0
      %864 = vmatpush1.msra.mxu0 0.0
      %865 = vmatprep.subr.mxu0 0.0
      %866 = vmatpush1.msra.mxu0 0.0
      %867 = vmatprep.subr.mxu0 0.0
      %868 = vmatpush1.msra.mxu0 0.0
      %869 = vmatprep.subr.mxu0 0.0
      %870 = vmatpush1.msra.mxu0 0.0
      %871 = vmatprep.subr.mxu0 0.0
      %872 = vmatpush1.msra.mxu0 0.0
      %873 = vmatprep.subr.mxu0 0.0
      %874 = vmatpush1.msra.mxu0 0.0
      %875 = vmatprep.subr.mxu0 0.0
      %876 = vmatpush1.msra.mxu0 0.0
      %877 = vmatprep.mubr.f32.mxu0 0.0
      %878 = vmatmul.mubr.f32.gmra.mrb[0].mxu0 %v811
      %v879 = vpop.f32.mrb[0].mxu0
      %v880 = vadd.f32 0.0, %v879
      %v881 = vpop.f32.mrb[0].mxu0
      %v882 = vadd.f32 0.0, %v881
      %883 = vdwg.mxu0
      %v884 = vadd.f32 %v790, %v880
      %v885 = vadd.f32 %v791, %v882
      %886 = vrot.lane.b32.xlu0 %v683, 113
      %v887 = vpop.permute.xlu0 %886
      %888 = vrot.lane.b32.xlu0 %v684, 113
      %v889 = vpop.permute.xlu0 %888
      %v890 = vsel %vm531, %v887, %v889
      %v891 = vsel %vm531, %v889, %v887
      %v892 = vmul.f32 %v890, %v540
      %v893 = vmul.f32 %v891, %v544
      %894 = vrot.lane.b32.xlu0 %v683, 112
      %v895 = vpop.permute.xlu0 %894
      %896 = vrot.lane.b32.xlu0 %v684, 112
      %v897 = vpop.permute.xlu0 %896
      %v898 = vsel %vm553, %v895, %v897
      %v899 = vsel %vm553, %v897, %v895
      %v900 = vmul.f32 %v898, %v562
      %v901 = vmul.f32 %v899, %v566
      %902 = vrot.lane.b32.xlu0 %v683, 111
      %v903 = vpop.permute.xlu0 %902
      %904 = vrot.lane.b32.xlu0 %v684, 111
      %v905 = vpop.permute.xlu0 %904
      %v906 = vsel %vm575, %v903, %v905
      %v907 = vsel %vm575, %v905, %v903
      %v908 = vmul.f32 %v906, %v584
      %v909 = vmul.f32 %v907, %v588
      %s910 = scalar_lea.vmem %s4, 16
      %v911 = vld [vmem:[%s910] sm:$0xff]
      %v913 = vsel %vm323, %v911, 0
      %915 = vmatprep.subr.mxu0 %v893
      %916 = vmatpush1.msra.mxu0 %v892
      %917 = vmatprep.subr.mxu0 %v901
      %918 = vmatpush1.msra.mxu0 %v900
      %919 = vmatprep.subr.mxu0 %v909
      %920 = vmatpush1.msra.mxu0 %v908
      %921 = vmatprep.subr.mxu0 0.0
      %922 = vmatpush1.msra.mxu0 0.0
      %923 = vmatprep.subr.mxu0 0.0
      %924 = vmatpush1.msra.mxu0 0.0
      %925 = vmatprep.subr.mxu0 0.0
      %926 = vmatpush1.msra.mxu0 0.0
      %927 = vmatprep.subr.mxu0 0.0
      %928 = vmatpush1.msra.mxu0 0.0
      %929 = vmatprep.subr.mxu0 0.0
      %930 = vmatpush1.msra.mxu0 0.0
      %931 = vmatprep.subr.mxu0 0.0
      %932 = vmatpush1.msra.mxu0 0.0
      %933 = vmatprep.subr.mxu0 0.0
      %934 = vmatpush1.msra.mxu0 0.0
      %935 = vmatprep.subr.mxu0 0.0
      %936 = vmatpush1.msra.mxu0 0.0
      %937 = vmatprep.subr.mxu0 0.0
      %938 = vmatpush1.msra.mxu0 0.0
      %939 = vmatprep.subr.mxu0 0.0
      %940 = vmatpush1.msra.mxu0 0.0
      %941 = vmatprep.subr.mxu0 0.0
      %942 = vmatpush1.msra.mxu0 0.0
      %943 = vmatprep.subr.mxu0 0.0
      %944 = vmatpush1.msra.mxu0 0.0
      %945 = vmatprep.subr.mxu0 0.0
      %946 = vmatpush1.msra.mxu0 0.0
      %947 = vmatprep.subr.mxu0 0.0
      %948 = vmatpush1.msra.mxu0 0.0
      %949 = vmatprep.subr.mxu0 0.0
      %950 = vmatpush1.msra.mxu0 0.0
      %951 = vmatprep.subr.mxu0 0.0
      %952 = vmatpush1.msra.mxu0 0.0
      %953 = vmatprep.subr.mxu0 0.0
      %954 = vmatpush1.msra.mxu0 0.0
      %955 = vmatprep.subr.mxu0 0.0
      %956 = vmatpush1.msra.mxu0 0.0
      %957 = vmatprep.subr.mxu0 0.0
      %958 = vmatpush1.msra.mxu0 0.0
      %959 = vmatprep.subr.mxu0 0.0
      %960 = vmatpush1.msra.mxu0 0.0
      %961 = vmatprep.subr.mxu0 0.0
      %962 = vmatpush1.msra.mxu0 0.0
      %963 = vmatprep.subr.mxu0 0.0
      %964 = vmatpush1.msra.mxu0 0.0
      %965 = vmatprep.subr.mxu0 0.0
      %966 = vmatpush1.msra.mxu0 0.0
      %967 = vmatprep.subr.mxu0 0.0
      %968 = vmatpush1.msra.mxu0 0.0
      %969 = vmatprep.subr.mxu0 0.0
      %970 = vmatpush1.msra.mxu0 0.0
      %971 = vmatprep.subr.mxu0 0.0
      %972 = vmatpush1.msra.mxu0 0.0
      %973 = vmatprep.subr.mxu0 0.0
      %974 = vmatpush1.msra.mxu0 0.0
      %975 = vmatprep.subr.mxu0 0.0
      %976 = vmatpush1.msra.mxu0 0.0
      %977 = vmatprep.subr.mxu0 0.0
      %978 = vmatpush1.msra.mxu0 0.0
      %979 = vmatprep.mubr.f32.mxu0 0.0
      %980 = vmatmul.mubr.f32.gmra.mrb[0].mxu0 %v913
      %v981 = vpop.f32.mrb[0].mxu0
      %v982 = vadd.f32 0.0, %v981
      %v983 = vpop.f32.mrb[0].mxu0
      %v984 = vadd.f32 0.0, %v983
      %985 = vdwg.mxu0
      %v986 = vadd.f32 %v884, %v982
      %v987 = vadd.f32 %v885, %v984
      %v988 = vxor.u32 %v986, 2147483648
      %v989 = vxor.u32 %v987, 2147483648
      %v990 = vmul.f32 %v988, 1.442695
      %v991 = vpow.pop %v990
      %v992 = vmul.f32 %v989, 1.442695
      %v993 = vpow.pop %v992
      %v994 = vadd.f32 %v991, 1.0
      %v995 = vadd.f32 %v993, 1.0
      %v996 = vrcp.pop %v994
      %v997 = vmul.f32 1.0, %v996
      %v998 = vrcp.pop %v995
      %v999 = vmul.f32 1.0, %v998
      %v1000 = vmul.f32 %v986, %v997
      %v1001 = vmul.f32 %v987, %v999
      %v1002 = vadd.f32 %v1000, %v252
      %v1003 = vadd.f32 %v1001, %v253
      %1004 = vst [vmem:[%s251] sm:$0xff] %v1002
      %1005 = vst [vmem:[%s251 + $0x8] sm:$0xff] %v1003
      %p1006 = scmp.lt.s32.totalorder %s17, 1
      %s1007 = scalar_select %p1006, %s17, 1
      %s1008 = smul.addr %s1007, 2
      %s1009 = smul.addr %s1008, 8
      %s1010 = scalar_lea.vmem %s6, %s1009
      // Predicated region
      $region45: #{_lambda_.1} parent=43 // pred_check
        %p1011 = pneg %p166
      $region46: #{_lambda_.1} parent=43 // pred_check_branch
        %1013 = sbr.rel (%p1011) target = $region48
      $region47: #{_lambda_.1} parent=43 // pred_region
        _
      $region48: #{_lambda_.1} parent=43 // pred_fallthru
        _
    $region44: #{_lambda_.1} parent=5 // pred_fallthru
      _
    %p1014 = scmp.le.s32.totalorder 2, %s12
    // Predicated region
    $region49: #{_lambda_.1} parent=5 // pred_check
      %p1015 = pneg %p1014
    $region50: #{_lambda_.1} parent=5 // pred_check_branch
      %1017 = sbr.rel (%p1015) target = $region52
    $region51: #{_lambda_.1} parent=5 // pred_region
      %s1018 = ssub.s32 %s12, 2
      // Predicated region
      $region53: #{_lambda_.1} parent=51 // pred_check
        %p1019 = pneg %p172
      $region54: #{_lambda_.1} parent=51 // pred_check_branch
        %1021 = sbr.rel (%p1019) target = $region56
      $region55: #{_lambda_.1} parent=51 // pred_region
        %p1022 = scmp.lt.s32.totalorder %s18, 1
        %s1023 = scalar_select %p1022, %s18, 1
        %s1024 = smul.addr %s1023, 2
        %s1025 = smul.addr %s1024, 8
        %s1026 = scalar_lea.vmem %s6, %s1025
      $region56: #{_lambda_.1} parent=51 // pred_fallthru
        _
    $region52: #{_lambda_.1} parent=5 // pred_fallthru
      _
  $region6: #{_lambda_.1} parent=0 // loop_footer
    %s16 = sadd.s32 1, %s12
  $region7: #{_lambda_.1} parent=0 // loop_footer_branch
    %11 = sbr.rel target = $region3
  $region8: #{_lambda_.1} parent=0 // loop_exit
    _

</llo_original>
